<compile_context>
chip_gen: v7x
topology: tpu7x:2x2x1
jax: 0.10.0
libtpu: 0.0.40
codegen_flags: <defaults>
</compile_context>

<pallas_src>
import functools

import jax
import jax.numpy as jnp
from jax.experimental import pallas as pl
from jax.experimental.pallas import tpu as pltpu

EPS = 1e-12          # F.normalize eps (also guards isolated-node 0/0)
NEG_SLOPE = 0.2      # LeakyReLU negative slope
LANE = 128
VMEM_LIMIT_BYTES = 32 * 1024 * 1024   # few-MiB working set; <= 48 MiB (v7x-safe)


def _round_up(a, b):
    return (a + b - 1) // b * b


def _node_tiling(n, max_tile):
    """Sublane tiling for the node axis; prefer >=2 tiles so both v7x TCs get work."""
    n_pad = _round_up(n, 8)
    if n_pad <= max_tile:
        if n_pad >= 16:
            tile = _round_up(pl.cdiv(n_pad, 2), 8)
            return _round_up(n_pad, tile), tile
        return n_pad, n_pad
    return _round_up(n_pad, max_tile), max_tile


def _edge_tiling(num_e, max_tile):
    e_pad = _round_up(num_e, 16)                   # 16: bf16 sublane packing
    if e_pad <= max_tile:
        return e_pad, e_pad
    return _round_up(e_pad, max_tile), max_tile


def _row_tiling(rows, max_tile):
    r_pad = _round_up(rows, 8)
    if r_pad <= max_tile:
        return r_pad, r_pad
    return _round_up(r_pad, max_tile), max_tile


# ----------------------------------------------------------------------------
# Small helper kernels (row-tiled, parallel grid)
# ----------------------------------------------------------------------------
def _l2norm_kernel(x_ref, o_ref, *, eps):
    x = x_ref[...]
    ss = jnp.sum(x * x, axis=1, keepdims=True)
    o_ref[...] = x * jax.lax.rsqrt(jnp.maximum(ss, eps * eps))


def _linear_kernel(x_ref, wt_ref, o_ref):
    o_ref[...] = jnp.dot(x_ref[...], wt_ref[...],
                         preferred_element_type=jnp.float32)


def l2_normalize(x, row_tile_max=1024):
    rows, d = x.shape
    r_pad, tile = _row_tiling(rows, row_tile_max)
    xp = x if r_pad == rows else jnp.zeros((r_pad, d), x.dtype).at[:rows].set(x)
    out = pl.pallas_call(
        functools.partial(_l2norm_kernel, eps=EPS),
        out_shape=jax.ShapeDtypeStruct((r_pad, d), jnp.float32),
        grid=(r_pad // tile,),
        in_specs=[pl.BlockSpec((tile, d), lambda i: (i, 0))],
        out_specs=pl.BlockSpec((tile, d), lambda i: (i, 0)),
        compiler_params=pltpu.CompilerParams(dimension_semantics=("parallel",)),
    )(xp)
    return out[:rows]


def linear(x, w_t, row_tile_max=1024):
    """x:(R,K) @ w_t:(K,N) -> (R,N).  w_t is the pre-transposed torch weight."""
    rows, k = x.shape
    n_out = w_t.shape[1]
    r_pad, tile = _row_tiling(rows, row_tile_max)
    xp = x if r_pad == rows else jnp.zeros((r_pad, k), x.dtype).at[:rows].set(x)
    out = pl.pallas_call(
        _linear_kernel,
        out_shape=jax.ShapeDtypeStruct((r_pad, n_out), jnp.float32),
        grid=(r_pad // tile,),
        in_specs=[pl.BlockSpec((tile, k), lambda i: (i, 0)),
                  pl.BlockSpec((k, n_out), lambda i: (0, 0))],
        out_specs=pl.BlockSpec((tile, n_out), lambda i: (i, 0)),
        compiler_params=pltpu.CompilerParams(dimension_semantics=("parallel",)),
    )(xp, w_t)
    return out[:rows]


# ----------------------------------------------------------------------------
# Pass 1: edge-parallel precompute.  Runs fc1 + per-head logits + exp exactly
# once per edge (per direction) and packs a lane-dense bf16 value tensor
#   columns [0:h_dim]            = exp(-leaky(a)) broadcast per head * c_ijk
#   columns [h_dim:h_dim+heads]  = exp(-leaky(a))        (softmax row-sum term)
#   columns [h_dim+heads:v_pad]  = 0                      (lane padding)
# ----------------------------------------------------------------------------
def _edge_precompute_kernel(hijk_ref, wcin_ref, wcout_ref, expv_ref,
                            vin_ref, vout_ref, *, slope, h_dim, heads, v_pad):
    hijk = hijk_ref[...].astype(jnp.bfloat16)          # bf16 MXU operand
    expand_v = expv_ref[...]                            # (heads, v_pad) f32
    col = jax.lax.broadcasted_iota(jnp.int32, (1, v_pad), 1)
    keep_c = (col < h_dim).astype(jnp.float32)          # 1 on the c columns
    put_one = jnp.logical_and(col >= h_dim,
                              col < h_dim + heads).astype(jnp.float32)

    def one_direction(wc_ref, out_ref):
        # single lane-dense matmul: columns [0:h_dim] = c_ijk,
        # [h_dim:h_dim+heads] = per-head logits a_ijk, rest 0.
        ca = jnp.dot(hijk, wc_ref[...], preferred_element_type=jnp.float32)
        a = ca[:, h_dim:h_dim + heads]
        b = -jnp.where(a > 0, a, slope * a)              # -leaky_relu
        # TODO(synk): no running-max shift (matches the reference KBGAT
        #             formulation); exp may overflow for very large |logits|.
        ev = jnp.exp(b)                                  # f32 (EUP)
        evx = jnp.dot(ev, expand_v, preferred_element_type=jnp.float32)
        # pack [ev*c | ev | 0] without lane concatenation:
        out_ref[...] = (evx * (ca * keep_c + put_one)).astype(jnp.bfloat16)

    one_direction(wcin_ref, vin_ref)     # inbound  layer weights
    one_direction(wcout_ref, vout_ref)   # outbound layer weights


# ----------------------------------------------------------------------------
# Pass 2: node x edge scatter + fused epilogue
#   grid = (node_tiles "parallel", edge_tiles "arbitrary")
#   one bf16 adjacency matmul per direction accumulates both the weighted
#   features and the softmax row-sums into f32 node-resident accumulators;
#   finalize does softmax-normalize / ELU / L2 / MergeLayer (+ EntityLayer
#   residual + final normalize) and stores a lane-dense padded output tile.
# ----------------------------------------------------------------------------
def _scatter_merge_kernel(ends_ref, vin_ref, vout_ref, exph_ref,
                          mwi_ref, mbi_ref, mwo_ref, mbo_ref, mwl_ref, mbl_ref,
                          *rest, h_dim, heads, eps, with_entity):
    if with_entity:
        x_ref, went_ref, o_ref, acc_i, acc_o = rest
    else:
        o_ref, acc_i, acc_o = rest
        x_ref = went_ref = None

    e_step = pl.program_id(1)
    n_tile = acc_i.shape[0]

    @pl.when(e_step == 0)
    def _init():
        acc_i[...] = jnp.zeros_like(acc_i)
        acc_o[...] = jnp.zeros_like(acc_o)

    # node ids of this tile along sublanes; compare against the (1, e_tile)
    # end-node rows to build the 0/1 adjacency tile directly (bf16 is exact).
    node_ids = (pl.program_id(0) * n_tile
                + jax.lax.broadcasted_iota(jnp.int32, (n_tile, 1), 0))
    adj_in = ((node_ids == ends_ref[0:1, :])
              .astype(jnp.float32).astype(jnp.bfloat16))
    adj_out = ((node_ids == ends_ref[1:2, :])
               .astype(jnp.float32).astype(jnp.bfloat16))

    acc_i[...] += jnp.dot(adj_in, vin_ref[...], preferred_element_type=jnp.float32)
    acc_o[...] += jnp.dot(adj_out, vout_ref[...], preferred_element_type=jnp.float32)

    @pl.when(e_step == pl.num_programs(1) - 1)
    def _finalize():
        expand = exph_ref[...]                           # (heads, h_dim)
        o_pad = mbi_ref.shape[1]

        def node_feats(acc):
            num = acc[:, :h_dim]
            rs = jnp.dot(acc[:, h_dim:h_dim + heads], expand,
                         preferred_element_type=jnp.float32)
            # isolated nodes: rs = 0 -> eps guard -> all-zero row (matches ref)
            h = num / jnp.maximum(rs, eps)               # scatter-softmax norm
            h = jnp.where(h > 0, h, jnp.exp(h) - 1.0)    # ELU
            ss = jnp.sum(h * h, axis=1, keepdims=True)
            return h * jax.lax.rsqrt(jnp.maximum(ss, eps * eps))   # L2 norm

        h_in = node_feats(acc_i[...])
        h_out = node_feats(acc_o[...])

        hi = jnp.dot(h_in, mwi_ref[...],
                     preferred_element_type=jnp.float32) + mbi_ref[...]
        ho = jnp.dot(h_out, mwo_ref[...],
                     preferred_element_type=jnp.float32) + mbo_ref[...]
        wl = mwl_ref[...]                                # (1, 2*o_pad)
        # lambda gate as a VPU row-reduce (no N=1 matmul on the MXU).
        lam = jax.nn.sigmoid(
            jnp.sum(hi * wl[:, :o_pad], axis=1, keepdims=True)
            + jnp.sum(ho * wl[:, o_pad:], axis=1, keepdims=True)
            + mbl_ref[...])
        h = lam * hi + (1.0 - lam) * ho

        if with_entity:
            h = h + jnp.dot(x_ref[...], went_ref[...],
                            preferred_element_type=jnp.float32)
            ss = jnp.sum(h * h, axis=1, keepdims=True)
            h = h * jax.lax.rsqrt(jnp.maximum(ss, eps * eps))

        o_ref[...] = h                                   # lane-dense padded store


def fused_layer(h_ijk, ends, p_in, p_out, p_merge, n, heads, out_size,
                x=None, w_ent_t=None, e_tile_max=2048, n_tile_max=256):
    """One DKBAT layer: dual attention + merge (+ entity residual + final norm)."""
    # TODO(synk): for KG-scale n >> n_tile, switch the scatter to sorted edges +
    #             PrefetchScalarGridSpec so each node tile only visits its own
    #             edge range (O(E) instead of O(node_tiles * E)).
    num_e, f_in = h_ijk.shape
    h_dim = heads * out_size
    v_pad = _round_up(h_dim + heads, LANE)       # packed value width (lane-dense)
    o_pad = p_merge["bi"].shape[1]               # padded hidden width of outputs
    with_entity = x is not None

    n_pad, n_tile = _node_tiling(n, n_tile_max)
    e_pad, e_tile = _edge_tiling(num_e, e_tile_max)

    hijk_p = (h_ijk if e_pad == num_e
              else jnp.zeros((e_pad, f_in), jnp.float32).at[:num_e].set(h_ijk))
    # padded edges point at node -1 -> adjacency row all zeros -> no contribution.
    ends_p = jnp.full((2, e_pad), -1, jnp.int32).at[:, :num_e].set(ends)

    # ---- pass 1: edge-parallel precompute (runs once per edge) --------------
    def _full1(a):
        return pl.BlockSpec(a.shape, lambda e: (0,) * a.ndim)

    vals_in, vals_out = pl.pallas_call(
        functools.partial(_edge_precompute_kernel, slope=NEG_SLOPE,
                          h_dim=h_dim, heads=heads, v_pad=v_pad),
        out_shape=(jax.ShapeDtypeStruct((e_pad, v_pad), jnp.bfloat16),
                   jax.ShapeDtypeStruct((e_pad, v_pad), jnp.bfloat16)),
        grid=(e_pad // e_tile,),
        in_specs=[pl.BlockSpec((e_tile, f_in), lambda e: (e, 0)),
                  _full1(p_in["wc"]), _full1(p_out["wc"]),
                  _full1(p_in["expand_v"])],
        out_specs=(pl.BlockSpec((e_tile, v_pad), lambda e: (e, 0)),
                   pl.BlockSpec((e_tile, v_pad), lambda e: (e, 0))),
        compiler_params=pltpu.CompilerParams(
            dimension_semantics=("parallel",),
            vmem_limit_bytes=VMEM_LIMIT_BYTES),
    )(hijk_p, p_in["wc"], p_out["wc"], p_in["expand_v"])

    # ---- pass 2: node x edge scatter + fused epilogue ------------------------
    inputs = [ends_p, vals_in, vals_out, p_in["expand_h"],
              p_merge["wiT"], p_merge["bi"], p_merge["woT"], p_merge["bo"],
              p_merge["wl"], p_merge["bl"]]

    def _full2(a):
        return pl.BlockSpec(a.shape, lambda i, e: (0,) * a.ndim)

    in_specs = [pl.BlockSpec((2, e_tile), lambda i, e: (0, e)),
                pl.BlockSpec((e_tile, v_pad), lambda i, e: (e, 0)),
                pl.BlockSpec((e_tile, v_pad), lambda i, e: (e, 0))]
    in_specs += [_full2(a) for a in inputs[3:]]

    if with_entity:
        x_dim = x.shape[1]
        x_p = (x if n_pad == x.shape[0]
               else jnp.zeros((n_pad, x_dim), jnp.float32).at[:x.shape[0]].set(x))
        inputs += [x_p, w_ent_t]
        in_specs += [pl.BlockSpec((n_tile, x_dim), lambda i, e: (i, 0)),
                     _full2(w_ent_t)]

    out = pl.pallas_call(
        functools.partial(_scatter_merge_kernel, h_dim=h_dim, heads=heads,
                          eps=EPS, with_entity=with_entity),
        out_shape=jax.ShapeDtypeStruct((n_pad, o_pad), jnp.float32),
        grid=(n_pad // n_tile, e_pad // e_tile),
        in_specs=in_specs,
        out_specs=pl.BlockSpec((n_tile, o_pad), lambda i, e: (i, 0)),
        scratch_shapes=[pltpu.VMEM((n_tile, v_pad), jnp.float32),
                        pltpu.VMEM((n_tile, v_pad), jnp.float32)],
        compiler_params=pltpu.CompilerParams(
            dimension_semantics=("parallel", "arbitrary"),
            vmem_limit_bytes=VMEM_LIMIT_BYTES),
    )(*inputs)
    return out[:n, :h_dim]


# ----------------------------------------------------------------------------
# Parameter init (Xavier-normal gain=1.414 like the module).  Weights are
# pre-transposed / pre-packed / pre-padded once here, outside the hot path.
# ----------------------------------------------------------------------------
def _xavier(key, shape, gain=1.414):
    fan_out, fan_in = shape[0], shape[-1]
    std = gain * (2.0 / (fan_in + fan_out)) ** 0.5
    return std * jax.random.normal(key, shape, dtype=jnp.float32)


def init_params(key, x_size, g_size, output_size, heads):
    h_dim = output_size * heads
    o_pad = _round_up(h_dim, LANE)
    ks = iter(jax.random.split(key, 32))

    def attn_params(in_h, in_g, out, nheads):
        hd = nheads * out
        f_in = 2 * in_h + in_g
        v_pad = _round_up(hd + nheads, LANE)
        fc1 = _xavier(next(ks), (hd, f_in))             # torch fc1.weight (out,in)
        watt = _xavier(next(ks), (nheads, out))         # torch weights_att
        w1t = fc1.T                                     # (f_in, hd), head-major cols
        # fold the per-head logit reduce into the fc1 matmul: a = hijk @ w1a
        w1a = jnp.einsum("fho,ho->fh", w1t.reshape(f_in, nheads, out), watt)
        wc = jnp.zeros((f_in, v_pad), jnp.float32)
        wc = wc.at[:, :hd].set(w1t).at[:, hd:hd + nheads].set(w1a)
        eye = jnp.eye(nheads, dtype=jnp.float32)
        expand_h = jnp.repeat(eye, out, axis=1)         # (heads, hd)
        expand_v = jnp.zeros((nheads, v_pad), jnp.float32)
        expand_v = expand_v.at[:, :hd].set(expand_h)
        expand_v = expand_v.at[:, hd:hd + nheads].set(eye)
        return {"wc": wc.astype(jnp.bfloat16),          # bf16 MXU operand
                "expand_v": expand_v, "expand_h": expand_h}

    def merge_params(h):
        pad = o_pad - h
        wi = _xavier(next(ks), (h, h))
        wo = _xavier(next(ks), (h, h))
        wl = _xavier(next(ks), (1, 2 * h))
        return {
            "wiT": jnp.pad(wi.T, ((0, 0), (0, pad))),   # (h, o_pad) lane-dense
            "bi": jnp.zeros((1, o_pad), jnp.float32),
            "woT": jnp.pad(wo.T, ((0, 0), (0, pad))),
            "bo": jnp.zeros((1, o_pad), jnp.float32),
            "wl": jnp.pad(wl.reshape(1, 2, h),
                          ((0, 0), (0, 0), (0, pad))).reshape(1, 2 * o_pad),
            "bl": jnp.zeros((1, 1), jnp.float32),
        }

    w_ent = _xavier(next(ks), (h_dim, x_size))
    w_rel = _xavier(next(ks), (h_dim, g_size))
    return {
        "in_input": attn_params(x_size, g_size, output_size, heads),
        "out_input": attn_params(x_size, g_size, output_size, heads),
        "merge_input": merge_params(h_dim),
        "in_output": attn_params(h_dim, h_dim, h_dim, 1),
        "out_output": attn_params(h_dim, h_dim, h_dim, 1),
        "merge_output": merge_params(h_dim),
        "w_entT": jnp.pad(w_ent.T, ((0, 0), (0, o_pad - h_dim))),  # (x_size, o_pad)
        # TODO(synk): SimpleRelationLayer assumed to be a bias-free linear g_size -> h_dim.
        "w_relT": w_rel.T,                                         # (g_size, h_dim)
    }


# ----------------------------------------------------------------------------
# DKBATNet forward (use_path=False, eval mode)
# ----------------------------------------------------------------------------
def dkbat_forward(params, x, g, edge_idx, edge_type, n, output_size, heads):
    h_dim = output_size * heads
    row, col = edge_idx[0], edge_idx[1]
    rel = edge_type
    # row 0 = inbound end nodes (col), row 1 = outbound end nodes (row)
    ends = jnp.stack([col, row], axis=0).astype(jnp.int32)

    x = l2_normalize(x)
    g = l2_normalize(g)

    # TODO(synk): edge gather + concat kept in XLA; fusing the x[row]/x[col]/g[rel]
    #             gather into the edge-precompute kernel (scalar-prefetched
    #             indices) would remove this (E, 2F+G) HBM intermediate.
    h_ijk = jnp.concatenate(
        [jnp.take(x, row, axis=0), jnp.take(x, col, axis=0),
         jnp.take(g, rel, axis=0)], axis=1)

    # ---- input layer: dual attention (heads) + merge -------------------------
    h = fused_layer(h_ijk, ends, params["in_input"], params["out_input"],
                    params["merge_input"], n, heads, output_size)
    # nn.Dropout in eval mode -> identity.

    # ---- relation projection --------------------------------------------------
    g_prime = linear(g, params["w_relT"])                           # (m, H)

    # ---- output layer: dual attention (1 head) + merge + entity + norm --------
    h_ijk2 = jnp.concatenate(
        [jnp.take(h, row, axis=0), jnp.take(h, col, axis=0),
         jnp.take(g_prime, rel, axis=0)], axis=1)

    h_prime = fused_layer(h_ijk2, ends, params["in_output"], params["out_output"],
                          params["merge_output"], n, 1, h_dim,
                          x=x, w_ent_t=params["w_entT"])

    g_prime = l2_normalize(g_prime)
    return h_prime, g_prime


# ----------------------------------------------------------------------------
if __name__ == "__main__":
    n, m = 8, 6                # entities, relations
    x_size, g_size = 16, 16    # embedding dims
    output_size, heads = 8, 2  # -> hidden H = 16
    E = 12                     # edges

    key = jax.random.PRNGKey(0)
    k_x, k_g, k_row, k_col, k_rel, k_p = jax.random.split(key, 6)
    x = jax.random.normal(k_x, (n, x_size), dtype=jnp.float32)
    g = jax.random.normal(k_g, (m, g_size), dtype=jnp.float32)
    edge_idx = jnp.stack([
        jax.random.randint(k_row, (E,), 0, n, dtype=jnp.int32),
        jax.random.randint(k_col, (E,), 0, n, dtype=jnp.int32),
    ], axis=0)
    edge_type = jax.random.randint(k_rel, (E,), 0, m, dtype=jnp.int32)

    params = init_params(k_p, x_size, g_size, output_size, heads)

    h_prime, g_prime = dkbat_forward(params, x, g, edge_idx, edge_type,
                                     n, output_size, heads)
    jax.block_until_ready((h_prime, g_prime))
    assert h_prime.shape == (n, output_size * heads)
    assert g_prime.shape == (m, output_size * heads)
    assert bool(jnp.all(jnp.isfinite(h_prime))) and bool(jnp.all(jnp.isfinite(g_prime)))
    print("KERNEL_OK")
</pallas_src>

<mosaic_0001>
module attributes {stable_mosaic.version = 11 : i64} {
  func.func @_l2norm_kernel(%arg0: i32, %arg1: memref<8x16xf32, #tpu.memory_space<vmem>>, %arg2: memref<8x16xf32, #tpu.memory_space<vmem>>) attributes {dimension_semantics = [#tpu.dimension_semantics<parallel>], iteration_bounds = array<i64: 1>, scalar_prefetch = 0 : i64, scratch_operands = 0 : i64, tpu.core_type = #tpu.core_type<tc>, window_params = [{transform_indices = @transform_0, window_bounds = array<i64: 8, 16>}, {transform_indices = @transform_1, window_bounds = array<i64: 8, 16>}]} {
    %c0 = arith.constant 0 : index
    %c0_0 = arith.constant 0 : index
    %0 = vector.load %arg1[%c0, %c0_0] : memref<8x16xf32, #tpu.memory_space<vmem>>, vector<8x16xf32>
    %1 = arith.mulf %0, %0 : vector<8x16xf32>
    %cst = arith.constant dense<0.000000e+00> : vector<8xf32>
    %2 = vector.multi_reduction <add>, %1, %cst [1] : vector<8x16xf32> to vector<8xf32>
    %3 = vector.shape_cast %2 : vector<8xf32> to vector<8x1xf32>
    %cst_1 = arith.constant 1.000000e-24 : f32
    %4 = vector.broadcast %cst_1 : f32 to vector<8x1xf32>
    %5 = arith.maximumf %3, %4 : vector<8x1xf32>
    %6 = math.rsqrt %5 : vector<8x1xf32>
    %7 = vector.broadcast %6 : vector<8x1xf32> to vector<8x16xf32>
    %8 = arith.mulf %0, %7 : vector<8x16xf32>
    %c0_2 = arith.constant 0 : index
    %c0_3 = arith.constant 0 : index
    %9 = vector.load %arg2[%c0_2, %c0_3] : memref<8x16xf32, #tpu.memory_space<vmem>>, vector<8x16xf32>
    tpu.vector_store %arg2[%c0_2, %c0_3], %8 {strides = array<i32>} : memref<8x16xf32, #tpu.memory_space<vmem>>, vector<8x16xf32>,
    return
  }
  func.func @transform_0(%arg0: i32) -> (i32, i32) {
    %c0_i32 = arith.constant 0 : i32
    %c0_i32_0 = arith.constant 0 : i32
    return %arg0, %c0_i32 : i32, i32
  }
  func.func @transform_1(%arg0: i32) -> (i32, i32) {
    %c0_i32 = arith.constant 0 : i32
    %c0_i32_0 = arith.constant 0 : i32
    return %arg0, %c0_i32 : i32, i32
  }
}

</mosaic_0001>

<llo_original>
// kernel: tpu_custom_call.1
$region0: #{tpu_custom_call.1}
  #allocation0 [shape = 'u32[]', space=smem, size = 0x4, offset = 0x4, fixed_abs, tag = 'smem constant byte address 0x4 - core index']
  #allocation1 [shape = 'u32[144,128]{1,0:T(1,128)}', space=vmem, size = 0x12000, scoped, tag = 'internal scratch']
  %s0 = inlined_call_operand.hbm [shape: f32[8,16], index: 0, kind: input, shape index: {}]
  %s1 = inlined_call_operand.hbm [shape: f32[8,16], index: 1, kind: output, shape index: {}]
  %s2 = sld [smem:[#allocation0]]
  $region18: #{tpu_custom_call.1} parent=0
    _
  %s4 = ssub.s32 1, %s2
  %s5 = scalar_select 0, %s4, %s2
  $region1: #{tpu_custom_call.1} parent=0
    #allocation2 [shape = 'u8[4096]{0}', space=vmem, size = 0x1000, scoped, tag = 'input window, operand 0, single buffered']
    #allocation3 [shape = 's32[1]{0}', space=sflag, size = 0x4, scoped, tag = 'scoped memory for tpu_custom_call.1']
    #allocation4 [shape = 's32[1]{0}', space=sflag, size = 0x4, scoped, tag = 'scoped memory for tpu_custom_call.1']
    #allocation5 [shape = 'u8[4096]{0}', space=vmem, size = 0x1000, scoped, tag = 'output window, operand 0, single buffered']
    %6 = vsyncpa [#allocation3], 0
    %7 = vsyncpa [#allocation4], 0
    // Predicated region
    $region2: #{tpu_custom_call.1} parent=1 // pred_check
      _
    $region3: #{tpu_custom_call.1} parent=1 // pred_check_branch
      %9 = sbr.rel (0) target = $region5
    $region4: #{tpu_custom_call.1} parent=1 // pred_region
      %s11 = ssub.s32 128, 128
      %12 = vsyncadd [#allocation3], %s11
      %s14 = sshll.u32 [#allocation2], 4
      %s15 = int_to_ptr.vmem [resolvable:$true] %s14
      %17 = dma.hbm_to_vmem [thread:$0]  %s0, 128, %s15, [#allocation3]
    $region5: #{tpu_custom_call.1} parent=1 // pred_fallthru
      _
    // Predicated region
    $region6: #{tpu_custom_call.1} parent=1 // pred_check
      _
    $region7: #{tpu_custom_call.1} parent=1 // pred_check_branch
      %19 = sbr.rel (0) target = $region9
    $region8: #{tpu_custom_call.1} parent=1 // pred_region
      %20 = dma.done [#allocation3], 128
    $region9: #{tpu_custom_call.1} parent=1 // pred_fallthru
      _
    %v21 = vld [vmem:[#allocation2] sm:$0xff]
    %v22 = vmul.f32 %v21, %v21
    %vm23 = vcmask 130048
    %v24 = vsel %vm23, %v22, 0.0
    %25 = vadd.xlane.f32.xlu0 %v24
    %v26 = vpop.xlane.xlu0 %25
    %v27 = vmax.f32 %v26, 1e-24
    %v28 = vrsqrt.pop %v27
    %v29 = vmul.f32 %v21, %v28
    %30 = vst.msk [vmem:[#allocation5] sm:$0xff] %vm23, %v29
    // Predicated region
    $region10: #{tpu_custom_call.1} parent=1 // pred_check
      _
    $region11: #{tpu_custom_call.1} parent=1 // pred_check_branch
      %32 = sbr.rel (0) target = $region13
    $region12: #{tpu_custom_call.1} parent=1 // pred_region
      %s34 = ssub.s32 128, 128
      %35 = vsyncadd [#allocation4], %s34
      %s37 = sshll.u32 [#allocation5], 4
      %s38 = int_to_ptr.vmem [resolvable:$true] %s37
      %40 = dma.vmem_to_hbm [thread:$0]  %s38, 128, %s1, [#allocation4]
    $region13: #{tpu_custom_call.1} parent=1 // pred_fallthru
      _
    // Predicated region
    $region14: #{tpu_custom_call.1} parent=1 // pred_check
      _
    $region15: #{tpu_custom_call.1} parent=1 // pred_check_branch
      %42 = sbr.rel (0) target = $region17
    $region16: #{tpu_custom_call.1} parent=1 // pred_region
      %43 = dma.done [#allocation4], 128
    $region17: #{tpu_custom_call.1} parent=1 // pred_fallthru
      _
    %44 = vsyncpa [#allocation3], 1
    %45 = vsyncpa [#allocation4], 1

</llo_original>
